<compile_context>
chip_gen: v6e
topology: v6e:2x2x1
jax: 0.10.0
libtpu: 0.0.40
codegen_flags: <defaults>
</compile_context>

<pallas_src>
import functools

import jax
import jax.numpy as jnp
from jax.experimental import pallas as pl
from jax.experimental.pallas import tpu as pltpu


def _gcnet_kernel(x_ref, wkw_ref, wkb_ref, w1_ref, b1_ref, a1_ref,
                  w2_ref, b2_ref, o_ref):
    # x_ref:  (1, C, HW)   one batch element, spatial flattened onto lanes
    # wkw_ref:(1, C)       wkb_ref:(1, 1)
    # w1_ref: (Ch, C)      b1_ref/a1_ref: (Ch, 1)     with Ch = C // ratio
    # w2_ref: (C, Ch)      b2_ref: (C, 1)
    # o_ref:  (1, C, HW)
    x = x_ref[0]                                                    # (C, HW) f32

    # ---- spatial attention pool: wk 1x1 conv + softmax over HW ----
    logits = jnp.dot(wkw_ref[...], x,
                     preferred_element_type=jnp.float32)            # (1, HW)  MXU
    logits = logits + wkb_ref[...]                                  # bias
    m = jnp.max(logits, axis=-1, keepdims=True)                     # (1, 1)
    e = jnp.exp(logits - m)                                         # (1, HW)  EUP
    s = jnp.sum(e, axis=-1, keepdims=True)                          # (1, 1)
    # context[c] = sum_hw x[c, hw] * softmax(logits)[hw]
    # (VPU broadcast-mul + XLU lane reduce; avoids a transpose / 1-lane MXU pop)
    context = jnp.sum(x * e, axis=-1, keepdims=True) / s            # (C, 1)

    # ---- channel_add bottleneck: 1x1 conv -> PReLU -> 1x1 conv ----
    t1 = jnp.dot(w1_ref[...], context,
                 preferred_element_type=jnp.float32) + b1_ref[...]  # (Ch, 1)
    t1 = jnp.where(t1 >= 0.0, t1, a1_ref[...] * t1)                 # PReLU (per channel)
    t2 = jnp.dot(w2_ref[...], t1,
                 preferred_element_type=jnp.float32) + b2_ref[...]  # (C, 1)

    # ---- broadcast add, fused with the lane-dense output store ----
    o_ref[0] = (x + t2).astype(o_ref.dtype)


def gcnet_forward(x_nchw, params):
    """GCNet forward (pool='att', fusions=['channel_add']).  NCHW in/out."""
    n, c, h, w = x_nchw.shape
    hw = h * w
    hidden = params["w1"].shape[0]
    x2 = x_nchw.reshape(n, c, hw)            # NCHW -> (N, C, HW): pure reshape

    out = pl.pallas_call(
        _gcnet_kernel,
        out_shape=jax.ShapeDtypeStruct((n, c, hw), x_nchw.dtype),
        grid=(n,),
        in_specs=[
            pl.BlockSpec((1, c, hw), lambda b: (b, 0, 0)),    # x (one batch element)
            pl.BlockSpec((1, c), lambda b: (0, 0)),           # wk weight (resident)
            pl.BlockSpec((1, 1), lambda b: (0, 0)),           # wk bias
            pl.BlockSpec((hidden, c), lambda b: (0, 0)),      # channel_add conv1 W
            pl.BlockSpec((hidden, 1), lambda b: (0, 0)),      # channel_add conv1 b
            pl.BlockSpec((hidden, 1), lambda b: (0, 0)),      # PReLU alpha
            pl.BlockSpec((c, hidden), lambda b: (0, 0)),      # channel_add conv2 W
            pl.BlockSpec((c, 1), lambda b: (0, 0)),           # channel_add conv2 b
        ],
        out_specs=pl.BlockSpec((1, c, hw), lambda b: (b, 0, 0)),
        compiler_params=pltpu.CompilerParams(
            dimension_semantics=("parallel",)),               # megacore over batch
    )(x2, params["wk_w"], params["wk_b"], params["w1"], params["b1"],
      params["a1"], params["w2"], params["b2"])

    return out.reshape(n, c, h, w)


def init_params(key, in_ch, ratio=8, zero_init_last=False):
    """Synthetic params matching the module's shapes.

    PyTorch's reset_parameters() zero-inits the LAST conv of channel_add_conv
    (w2, b2); that is a parameter-initialization detail only (forward math is
    unchanged).  Set zero_init_last=True to match it exactly (output then
    equals the input); default is random so the self-check is non-trivial.
    """
    hidden = in_ch // ratio
    k1, k2, k3, k4, k5, k6 = jax.random.split(key, 6)
    s0 = 1.0 / in_ch ** 0.5
    s2 = 1.0 / max(hidden, 1) ** 0.5
    p = {
        "wk_w": jax.random.uniform(k1, (1, in_ch), jnp.float32, -s0, s0),
        "wk_b": jax.random.uniform(k2, (1, 1), jnp.float32, -s0, s0),
        "w1": jax.random.uniform(k3, (hidden, in_ch), jnp.float32, -s0, s0),
        "b1": jax.random.uniform(k4, (hidden, 1), jnp.float32, -s0, s0),
        "a1": jnp.full((hidden, 1), 0.25, jnp.float32),       # PReLU default
        "w2": jax.random.uniform(k5, (in_ch, hidden), jnp.float32, -s2, s2),
        "b2": jax.random.uniform(k6, (in_ch, 1), jnp.float32, -s2, s2),
    }
    if zero_init_last:
        p["w2"] = jnp.zeros_like(p["w2"])
        p["b2"] = jnp.zeros_like(p["b2"])
    return p


# --- pure-JAX reference (for correctness check only) ---
def _ref_gcnet(x_nchw, params):
    n, c, h, w = x_nchw.shape
    xm = x_nchw.reshape(n, c, h * w)
    logits = jnp.einsum("ncs,c->ns", xm, params["wk_w"][0]) + params["wk_b"][0, 0]
    p = jax.nn.softmax(logits, axis=-1)
    context = jnp.einsum("ncs,ns->nc", xm, p)                    # (n, c)
    t1 = context @ params["w1"].T + params["b1"][:, 0]
    t1 = jnp.where(t1 >= 0, t1, params["a1"][:, 0] * t1)
    t2 = t1 @ params["w2"].T + params["b2"][:, 0]
    return x_nchw + t2[:, :, None, None]


if __name__ == "__main__":
    N, C, H, W, RATIO = 2, 32, 16, 16, 8    # hidden = C // RATIO = 4

    key = jax.random.PRNGKey(0)
    kx, kp = jax.random.split(key)
    x = jax.random.normal(kx, (N, C, H, W), jnp.float32)   # NCHW, like PyTorch
    params = init_params(kp, C, RATIO)

    out = gcnet_forward(x, params)
    out = jax.block_until_ready(out)
    assert out.shape == (N, C, H, W), out.shape

    ref = _ref_gcnet(x, params)
    assert jnp.allclose(out, ref, rtol=1e-4, atol=1e-4), \
        float(jnp.max(jnp.abs(out - ref)))

    print("KERNEL_OK")
</pallas_src>

<mosaic_0001>
module attributes {stable_mosaic.version = 11 : i64} {
  func.func @_gcnet_kernel(%arg0: i32, %arg1: memref<1x32x256xf32, #tpu.memory_space<vmem>>, %arg2: memref<1x32xf32, #tpu.memory_space<vmem>>, %arg3: memref<1x1xf32, #tpu.memory_space<vmem>>, %arg4: memref<4x32xf32, #tpu.memory_space<vmem>>, %arg5: memref<4x1xf32, #tpu.memory_space<vmem>>, %arg6: memref<4x1xf32, #tpu.memory_space<vmem>>, %arg7: memref<32x4xf32, #tpu.memory_space<vmem>>, %arg8: memref<32x1xf32, #tpu.memory_space<vmem>>, %arg9: memref<1x32x256xf32, #tpu.memory_space<vmem>>) attributes {dimension_semantics = [#tpu.dimension_semantics<parallel>], iteration_bounds = array<i64: 2>, scalar_prefetch = 0 : i64, scratch_operands = 0 : i64, tpu.core_type = #tpu.core_type<tc>, window_params = [{transform_indices = @transform_0, window_bounds = array<i64: 1, 32, 256>}, {pipeline_mode = #tpu.pipeline_mode<synchronous>, transform_indices = @transform_1, window_bounds = array<i64: 1, 32>}, {pipeline_mode = #tpu.pipeline_mode<synchronous>, transform_indices = @transform_2, window_bounds = array<i64: 1, 1>}, {pipeline_mode = #tpu.pipeline_mode<synchronous>, transform_indices = @transform_3, window_bounds = array<i64: 4, 32>}, {pipeline_mode = #tpu.pipeline_mode<synchronous>, transform_indices = @transform_4, window_bounds = array<i64: 4, 1>}, {pipeline_mode = #tpu.pipeline_mode<synchronous>, transform_indices = @transform_5, window_bounds = array<i64: 4, 1>}, {pipeline_mode = #tpu.pipeline_mode<synchronous>, transform_indices = @transform_6, window_bounds = array<i64: 32, 4>}, {pipeline_mode = #tpu.pipeline_mode<synchronous>, transform_indices = @transform_7, window_bounds = array<i64: 32, 1>}, {transform_indices = @transform_8, window_bounds = array<i64: 1, 32, 256>}]} {
    %c0 = arith.constant 0 : index
    %c0_0 = arith.constant 0 : index
    %c0_1 = arith.constant 0 : index
    %0 = vector.load %arg1[%c0, %c0_0, %c0_1] : memref<1x32x256xf32, #tpu.memory_space<vmem>>, vector<1x32x256xf32>
    %1 = vector.shape_cast %0 : vector<1x32x256xf32> to vector<32x256xf32>
    %c0_2 = arith.constant 0 : index
    %c0_3 = arith.constant 0 : index
    %2 = vector.load %arg2[%c0_2, %c0_3] : memref<1x32xf32, #tpu.memory_space<vmem>>, vector<1x32xf32>
    %cst = arith.constant dense<0.000000e+00> : vector<1x256xf32>
    %3 = tpu.matmul %2, %1, %cst {dimension_numbers = #tpu.dot_dimension_numbers<[1], [0], [0], [1], [0, 0, 1, 1], [], []>} : vector<1x32xf32>, vector<32x256xf32>, vector<1x256xf32> -> vector<1x256xf32>
    %c0_4 = arith.constant 0 : index
    %c0_5 = arith.constant 0 : index
    %4 = vector.load %arg3[%c0_4, %c0_5] : memref<1x1xf32, #tpu.memory_space<vmem>>, vector<1x1xf32>
    %5 = vector.broadcast %4 : vector<1x1xf32> to vector<1x256xf32>
    %6 = arith.addf %3, %5 : vector<1x256xf32>
    %cst_6 = arith.constant dense<0xFF800000> : vector<1xf32>
    %7 = vector.multi_reduction <maximumf>, %6, %cst_6 [1] : vector<1x256xf32> to vector<1xf32>
    %8 = vector.shape_cast %7 : vector<1xf32> to vector<1x1xf32>
    %9 = vector.broadcast %8 : vector<1x1xf32> to vector<1x256xf32>
    %10 = arith.subf %6, %9 : vector<1x256xf32>
    %11 = math.exp %10 : vector<1x256xf32>
    %cst_7 = arith.constant dense<0.000000e+00> : vector<1xf32>
    %12 = vector.multi_reduction <add>, %11, %cst_7 [1] : vector<1x256xf32> to vector<1xf32>
    %13 = vector.shape_cast %12 : vector<1xf32> to vector<1x1xf32>
    %14 = vector.broadcast %11 : vector<1x256xf32> to vector<32x256xf32>
    %15 = arith.mulf %1, %14 : vector<32x256xf32>
    %cst_8 = arith.constant dense<0.000000e+00> : vector<32xf32>
    %16 = vector.multi_reduction <add>, %15, %cst_8 [1] : vector<32x256xf32> to vector<32xf32>
    %17 = vector.shape_cast %16 : vector<32xf32> to vector<32x1xf32>
    %18 = vector.broadcast %13 : vector<1x1xf32> to vector<32x1xf32>
    %19 = arith.divf %17, %18 : vector<32x1xf32>
    %c0_9 = arith.constant 0 : index
    %c0_10 = arith.constant 0 : index
    %20 = vector.load %arg4[%c0_9, %c0_10] : memref<4x32xf32, #tpu.memory_space<vmem>>, vector<4x32xf32>
    %cst_11 = arith.constant dense<0.000000e+00> : vector<4x1xf32>
    %21 = tpu.matmul %20, %19, %cst_11 {dimension_numbers = #tpu.dot_dimension_numbers<[1], [0], [0], [1], [0, 0, 1, 1], [], []>} : vector<4x32xf32>, vector<32x1xf32>, vector<4x1xf32> -> vector<4x1xf32>
    %c0_12 = arith.constant 0 : index
    %c0_13 = arith.constant 0 : index
    %22 = vector.load %arg5[%c0_12, %c0_13] : memref<4x1xf32, #tpu.memory_space<vmem>>, vector<4x1xf32>
    %23 = arith.addf %21, %22 : vector<4x1xf32>
    %cst_14 = arith.constant 0.000000e+00 : f32
    %24 = vector.broadcast %cst_14 : f32 to vector<4x1xf32>
    %25 = arith.cmpf oge, %23, %24 : vector<4x1xf32>
    %c0_15 = arith.constant 0 : index
    %c0_16 = arith.constant 0 : index
    %26 = vector.load %arg6[%c0_15, %c0_16] : memref<4x1xf32, #tpu.memory_space<vmem>>, vector<4x1xf32>
    %27 = arith.mulf %26, %23 : vector<4x1xf32>
    %28 = arith.select %25, %23, %27 : vector<4x1xi1>, vector<4x1xf32>
    %c0_17 = arith.constant 0 : index
    %c0_18 = arith.constant 0 : index
    %29 = vector.load %arg7[%c0_17, %c0_18] : memref<32x4xf32, #tpu.memory_space<vmem>>, vector<32x4xf32>
    %cst_19 = arith.constant dense<0.000000e+00> : vector<32x1xf32>
    %30 = tpu.matmul %29, %28, %cst_19 {dimension_numbers = #tpu.dot_dimension_numbers<[1], [0], [0], [1], [0, 0, 1, 1], [], []>} : vector<32x4xf32>, vector<4x1xf32>, vector<32x1xf32> -> vector<32x1xf32>
    %c0_20 = arith.constant 0 : index
    %c0_21 = arith.constant 0 : index
    %31 = vector.load %arg8[%c0_20, %c0_21] : memref<32x1xf32, #tpu.memory_space<vmem>>, vector<32x1xf32>
    %32 = arith.addf %30, %31 : vector<32x1xf32>
    %33 = vector.broadcast %32 : vector<32x1xf32> to vector<32x256xf32>
    %34 = arith.addf %1, %33 : vector<32x256xf32>
    %c0_22 = arith.constant 0 : index
    %c0_23 = arith.constant 0 : index
    %c0_24 = arith.constant 0 : index
    %35 = vector.load %arg9[%c0_22, %c0_23, %c0_24] : memref<1x32x256xf32, #tpu.memory_space<vmem>>, vector<1x32x256xf32>
    %36 = vector.shape_cast %35 : vector<1x32x256xf32> to vector<32x256xf32>
    %37 = vector.shape_cast %34 : vector<32x256xf32> to vector<1x32x256xf32>
    tpu.vector_store %arg9[%c0_22, %c0_23, %c0_24], %37 {strides = array<i32>} : memref<1x32x256xf32, #tpu.memory_space<vmem>>, vector<1x32x256xf32>,
    return
  }
  func.func @transform_0(%arg0: i32) -> (i32, i32, i32) {
    %c0_i32 = arith.constant 0 : i32
    %c0_i32_0 = arith.constant 0 : i32
    %c0_i32_1 = arith.constant 0 : i32
    return %arg0, %c0_i32, %c0_i32_0 : i32, i32, i32
  }
  func.func @transform_1(%arg0: i32) -> (i32, i32) {
    %c0_i32 = arith.constant 0 : i32
    %c0_i32_0 = arith.constant 0 : i32
    %c0_i32_1 = arith.constant 0 : i32
    return %c0_i32, %c0_i32_0 : i32, i32
  }
  func.func @transform_2(%arg0: i32) -> (i32, i32) {
    %c0_i32 = arith.constant 0 : i32
    %c0_i32_0 = arith.constant 0 : i32
    %c0_i32_1 = arith.constant 0 : i32
    return %c0_i32, %c0_i32_0 : i32, i32
  }
  func.func @transform_3(%arg0: i32) -> (i32, i32) {
    %c0_i32 = arith.constant 0 : i32
    %c0_i32_0 = arith.constant 0 : i32
    %c0_i32_1 = arith.constant 0 : i32
    return %c0_i32, %c0_i32_0 : i32, i32
  }
  func.func @transform_4(%arg0: i32) -> (i32, i32) {
    %c0_i32 = arith.constant 0 : i32
    %c0_i32_0 = arith.constant 0 : i32
    %c0_i32_1 = arith.constant 0 : i32
    return %c0_i32, %c0_i32_0 : i32, i32
  }
  func.func @transform_5(%arg0: i32) -> (i32, i32) {
    %c0_i32 = arith.constant 0 : i32
    %c0_i32_0 = arith.constant 0 : i32
    %c0_i32_1 = arith.constant 0 : i32
    return %c0_i32, %c0_i32_0 : i32, i32
  }
  func.func @transform_6(%arg0: i32) -> (i32, i32) {
    %c0_i32 = arith.constant 0 : i32
    %c0_i32_0 = arith.constant 0 : i32
    %c0_i32_1 = arith.constant 0 : i32
    return %c0_i32, %c0_i32_0 : i32, i32
  }
  func.func @transform_7(%arg0: i32) -> (i32, i32) {
    %c0_i32 = arith.constant 0 : i32
    %c0_i32_0 = arith.constant 0 : i32
    %c0_i32_1 = arith.constant 0 : i32
    return %c0_i32, %c0_i32_0 : i32, i32
  }
  func.func @transform_8(%arg0: i32) -> (i32, i32, i32) {
    %c0_i32 = arith.constant 0 : i32
    %c0_i32_0 = arith.constant 0 : i32
    %c0_i32_1 = arith.constant 0 : i32
    return %arg0, %c0_i32, %c0_i32_0 : i32, i32, i32
  }
}

</mosaic_0001>

<llo_original>
// kernel: tpu_custom_call.1
$region0: #{tpu_custom_call.1}
  #allocation0 [shape = 'u32[]', space=smem, size = 0x4, offset = 0x4, fixed_abs, tag = 'smem constant byte address 0x4 - core index']
  #allocation1 [shape = 'u32[144,128]{1,0:T(1,128)}', space=vmem, size = 0x12000, scoped, tag = 'internal scratch']
  #allocation2 [shape = 'f32[1,1]{1,0:T(1,128)S(1)}', space=vmem, size = 0x200, scoped, tag = 'scoped memory for tpu_custom_call.1']
  %s0 = inlined_call_operand.hbm [shape: f32[2,32,256], index: 0, kind: input, shape index: {}]
  %s1 = inlined_call_operand.vmem [shape: f32[1,32], index: 1, kind: input, shape index: {}]
  %s2 = inlined_call_operand.<no memory space> [shape: f32[1,1], index: 2, kind: input, shape index: {}]
  %s3 = inlined_call_operand.vmem [shape: f32[4,32], index: 3, kind: input, shape index: {}]
  %s4 = inlined_call_operand.vmem [shape: f32[4,1], index: 4, kind: input, shape index: {}]
  %s5 = inlined_call_operand.vmem [shape: f32[4,1], index: 5, kind: input, shape index: {}]
  %s6 = inlined_call_operand.vmem [shape: f32[32,4], index: 6, kind: input, shape index: {}]
  %s7 = inlined_call_operand.vmem [shape: f32[32,1], index: 7, kind: input, shape index: {}]
  %s8 = inlined_call_operand.hbm [shape: f32[2,32,256], index: 8, kind: output, shape index: {}]
  %s9 = sld [smem:[#allocation0]]
  $region69: #{tpu_custom_call.1} parent=0
    _
  %s11 = ssub.s32 1, %s9
  %s12 = scalar_select 0, %s11, %s9
  %v13 = vstv %s2
  %14 = vst [vmem:[#allocation2] sm:$0x1] %v13
  $region1: #{tpu_custom_call.1} parent=0
    #allocation3 [shape = 'u8[65536]{0}', space=vmem, size = 0x10000, scoped, tag = 'input window, operand 0']
    #allocation4 [shape = 's32[2]{0}', space=sflag, size = 0x8, scoped, tag = 'scoped memory for tpu_custom_call.1']
    #allocation5 [shape = 's32[2]{0}', space=sflag, size = 0x8, scoped, tag = 'scoped memory for tpu_custom_call.1']
    #allocation6 [shape = 'u8[65536]{0}', space=vmem, size = 0x10000, scoped, tag = 'output window, operand 0']
    %15 = vsyncpa [#allocation4], 0
    %s16 = scalar_lea.sflag [#allocation4], 1
    %17 = vsyncpa %s16, 0
    %18 = vsyncpa [#allocation5], 0
    %s19 = scalar_lea.sflag [#allocation5], 1
    %20 = vsyncpa %s19, 0
    loop: start=0, step=1, limit=4
    $region2: #{tpu_custom_call.1} parent=1 // loop_pre_header
      _
    $region3: #{tpu_custom_call.1} parent=1 // loop_header
      %s22 = sphi 0, %s26
      %p23 = scmp.ge.s32.totalorder %s22, 4
      %s32 = sphi 0, %s34
      %s35 = sphi 0, %s32
      %s36 = sphi 0, %s35
      %s52 = sphi 0, %s36
      %s56 = sphi 0, %s56
      %s58 = sphi 0, %s56
      %s59 = sphi 0, %s58
      %s73 = sphi 0, %s59
      %s77 = sphi 0, %s77
      %s79 = sphi 0, %s77
      %s80 = sphi 0, %s79
      %s94 = sphi 0, %s80
      %s98 = sphi 0, %s98
      %s100 = sphi 0, %s98
      %s101 = sphi 0, %s100
      %s115 = sphi 0, %s101
      %s119 = sphi 0, %s119
      %s121 = sphi 0, %s119
      %s122 = sphi 0, %s121
      %s136 = sphi 0, %s122
      %s140 = sphi 0, %s140
      %s142 = sphi 0, %s140
      %s143 = sphi 0, %s142
      %s157 = sphi 0, %s143
      %s161 = sphi 0, %s161
      %s163 = sphi 0, %s161
      %s164 = sphi 0, %s163
      %s178 = sphi 0, %s164
      %s182 = sphi 0, %s182
      %s184 = sphi 0, %s182
      %s185 = sphi 0, %s184
      %s199 = sphi 0, %s185
      %s205 = sphi 0, %s207
      %s208 = sphi 0, %s205
      %s209 = sphi 0, %s208
      %s225 = sphi 0, %s209
    $region4: #{tpu_custom_call.1} parent=1 // loop_header_branch
      %25 = sbr.rel (%p23) target = $region8
    $region5: #{tpu_custom_call.1} parent=1 // loop_body
      %s27 = ssub.s32 %s22, 1
      %s28 = ssub.s32 %s22, 2
      %s29 = sadd.s32 %s22, 1
      %s30 = ssub.s32 %s22, %s29
      %p31 = scmp.eq.s32.totalorder %s30, 0
      %s33 = sadd.s32 %s32, 1
      %s34 = scalar_select %p31, %s32, %s33
      %p37 = pneg %p31
      %p38 = scmp.eq.s32.totalorder %s22, 1
      %p39 = por %p37, %p38
      %p40 = scmp.ne.s32.totalorder %s32, %s35
      %p41 = scmp.eq.s32.totalorder %s22, 0
      %p42 = por %p40, %p41
      %p43 = scmp.ne.s32.totalorder %s32, %s35
      %p44 = scmp.eq.s32.totalorder %s27, 1
      %p45 = por %p43, %p44
      %p46 = scmp.ne.s32.totalorder %s35, %s36
      %p47 = scmp.eq.s32.totalorder %s27, 0
      %p48 = por %p46, %p47
      %p49 = scmp.ne.s32.totalorder %s35, %s36
      %p50 = scmp.eq.s32.totalorder %s28, 1
      %p51 = por %p49, %p50
      %p53 = scmp.ne.s32.totalorder %s36, %s52
      %p54 = scmp.eq.s32.totalorder %s28, 0
      %p55 = por %p53, %p54
      %s57 = sadd.s32 %s56, 1
      %p60 = scmp.eq.s32.totalorder %s22, 1
      %p61 = scmp.ne.s32.totalorder %s56, %s58
      %p62 = scmp.eq.s32.totalorder %s22, 0
      %p63 = por %p61, %p62
      %p64 = scmp.ne.s32.totalorder %s56, %s58
      %p65 = scmp.eq.s32.totalorder %s27, 1
      %p66 = por %p64, %p65
      %p67 = scmp.ne.s32.totalorder %s58, %s59
      %p68 = scmp.eq.s32.totalorder %s27, 0
      %p69 = por %p67, %p68
      %p70 = scmp.ne.s32.totalorder %s58, %s59
      %p71 = scmp.eq.s32.totalorder %s28, 1
      %p72 = por %p70, %p71
      %p74 = scmp.ne.s32.totalorder %s59, %s73
      %p75 = scmp.eq.s32.totalorder %s28, 0
      %p76 = por %p74, %p75
      %s78 = sadd.s32 %s77, 1
      %p81 = scmp.eq.s32.totalorder %s22, 1
      %p82 = scmp.ne.s32.totalorder %s77, %s79
      %p83 = scmp.eq.s32.totalorder %s22, 0
      %p84 = por %p82, %p83
      %p85 = scmp.ne.s32.totalorder %s77, %s79
      %p86 = scmp.eq.s32.totalorder %s27, 1
      %p87 = por %p85, %p86
      %p88 = scmp.ne.s32.totalorder %s79, %s80
      %p89 = scmp.eq.s32.totalorder %s27, 0
      %p90 = por %p88, %p89
      %p91 = scmp.ne.s32.totalorder %s79, %s80
      %p92 = scmp.eq.s32.totalorder %s28, 1
      %p93 = por %p91, %p92
      %p95 = scmp.ne.s32.totalorder %s80, %s94
      %p96 = scmp.eq.s32.totalorder %s28, 0
      %p97 = por %p95, %p96
      %s99 = sadd.s32 %s98, 1
      %p102 = scmp.eq.s32.totalorder %s22, 1
      %p103 = scmp.ne.s32.totalorder %s98, %s100
      %p104 = scmp.eq.s32.totalorder %s22, 0
      %p105 = por %p103, %p104
      %p106 = scmp.ne.s32.totalorder %s98, %s100
      %p107 = scmp.eq.s32.totalorder %s27, 1
      %p108 = por %p106, %p107
      %p109 = scmp.ne.s32.totalorder %s100, %s101
      %p110 = scmp.eq.s32.totalorder %s27, 0
      %p111 = por %p109, %p110
      %p112 = scmp.ne.s32.totalorder %s100, %s101
      %p113 = scmp.eq.s32.totalorder %s28, 1
      %p114 = por %p112, %p113
      %p116 = scmp.ne.s32.totalorder %s101, %s115
      %p117 = scmp.eq.s32.totalorder %s28, 0
      %p118 = por %p116, %p117
      %s120 = sadd.s32 %s119, 1
      %p123 = scmp.eq.s32.totalorder %s22, 1
      %p124 = scmp.ne.s32.totalorder %s119, %s121
      %p125 = scmp.eq.s32.totalorder %s22, 0
      %p126 = por %p124, %p125
      %p127 = scmp.ne.s32.totalorder %s119, %s121
      %p128 = scmp.eq.s32.totalorder %s27, 1
      %p129 = por %p127, %p128
      %p130 = scmp.ne.s32.totalorder %s121, %s122
      %p131 = scmp.eq.s32.totalorder %s27, 0
      %p132 = por %p130, %p131
      %p133 = scmp.ne.s32.totalorder %s121, %s122
      %p134 = scmp.eq.s32.totalorder %s28, 1
      %p135 = por %p133, %p134
      %p137 = scmp.ne.s32.totalorder %s122, %s136
      %p138 = scmp.eq.s32.totalorder %s28, 0
      %p139 = por %p137, %p138
      %s141 = sadd.s32 %s140, 1
      %p144 = scmp.eq.s32.totalorder %s22, 1
      %p145 = scmp.ne.s32.totalorder %s140, %s142
      %p146 = scmp.eq.s32.totalorder %s22, 0
      %p147 = por %p145, %p146
      %p148 = scmp.ne.s32.totalorder %s140, %s142
      %p149 = scmp.eq.s32.totalorder %s27, 1
      %p150 = por %p148, %p149
      %p151 = scmp.ne.s32.totalorder %s142, %s143
      %p152 = scmp.eq.s32.totalorder %s27, 0
      %p153 = por %p151, %p152
      %p154 = scmp.ne.s32.totalorder %s142, %s143
      %p155 = scmp.eq.s32.totalorder %s28, 1
      %p156 = por %p154, %p155
      %p158 = scmp.ne.s32.totalorder %s143, %s157
      %p159 = scmp.eq.s32.totalorder %s28, 0
      %p160 = por %p158, %p159
      %s162 = sadd.s32 %s161, 1
      %p165 = scmp.eq.s32.totalorder %s22, 1
      %p166 = scmp.ne.s32.totalorder %s161, %s163
      %p167 = scmp.eq.s32.totalorder %s22, 0
      %p168 = por %p166, %p167
      %p169 = scmp.ne.s32.totalorder %s161, %s163
      %p170 = scmp.eq.s32.totalorder %s27, 1
      %p171 = por %p169, %p170
      %p172 = scmp.ne.s32.totalorder %s163, %s164
      %p173 = scmp.eq.s32.totalorder %s27, 0
      %p174 = por %p172, %p173
      %p175 = scmp.ne.s32.totalorder %s163, %s164
      %p176 = scmp.eq.s32.totalorder %s28, 1
      %p177 = por %p175, %p176
      %p179 = scmp.ne.s32.totalorder %s164, %s178
      %p180 = scmp.eq.s32.totalorder %s28, 0
      %p181 = por %p179, %p180
      %s183 = sadd.s32 %s182, 1
      %p186 = scmp.eq.s32.totalorder %s22, 1
      %p187 = scmp.ne.s32.totalorder %s182, %s184
      %p188 = scmp.eq.s32.totalorder %s22, 0
      %p189 = por %p187, %p188
      %p190 = scmp.ne.s32.totalorder %s182, %s184
      %p191 = scmp.eq.s32.totalorder %s27, 1
      %p192 = por %p190, %p191
      %p193 = scmp.ne.s32.totalorder %s184, %s185
      %p194 = scmp.eq.s32.totalorder %s27, 0
      %p195 = por %p193, %p194
      %p196 = scmp.ne.s32.totalorder %s184, %s185
      %p197 = scmp.eq.s32.totalorder %s28, 1
      %p198 = por %p196, %p197
      %p200 = scmp.ne.s32.totalorder %s185, %s199
      %p201 = scmp.eq.s32.totalorder %s28, 0
      %p202 = por %p200, %p201
      %s203 = ssub.s32 %s22, %s29
      %p204 = scmp.eq.s32.totalorder %s203, 0
      %s206 = sadd.s32 %s205, 1
      %s207 = scalar_select %p204, %s205, %s206
      %p210 = pneg %p204
      %p211 = scmp.eq.s32.totalorder %s22, 1
      %p212 = por %p210, %p211
      %p213 = scmp.ne.s32.totalorder %s205, %s208
      %p214 = scmp.eq.s32.totalorder %s22, 0
      %p215 = por %p213, %p214
      %p216 = scmp.ne.s32.totalorder %s205, %s208
      %p217 = scmp.eq.s32.totalorder %s27, 1
      %p218 = por %p216, %p217
      %p219 = scmp.ne.s32.totalorder %s208, %s209
      %p220 = scmp.eq.s32.totalorder %s27, 0
      %p221 = por %p219, %p220
      %p222 = scmp.ne.s32.totalorder %s208, %s209
      %p223 = scmp.eq.s32.totalorder %s28, 1
      %p224 = por %p222, %p223
      %p226 = scmp.ne.s32.totalorder %s209, %s225
      %p227 = scmp.eq.s32.totalorder %s28, 0
      %p228 = por %p226, %p227
      %p229 = scmp.le.s32.totalorder 1, %s22
      %p230 = scmp.lt.s32.totalorder %s22, 3
      %p231 = pnand %p229, %p230
      %p232 = pneg %p231
      // Predicated region
      $region9: #{tpu_custom_call.1} parent=5 // pred_check
        _
      $region10: #{tpu_custom_call.1} parent=5 // pred_check_branch
        %234 = sbr.rel (%p231) target = $region12
      $region11: #{tpu_custom_call.1} parent=5 // pred_region
        %s235 = ssub.s32 %s22, 1
        // Predicated region
        $region13: #{tpu_custom_call.1} parent=11 // pred_check
          %p236 = pneg %p69
        $region14: #{tpu_custom_call.1} parent=11 // pred_check_branch
          %238 = sbr.rel (%p236) target = $region16
        $region15: #{tpu_custom_call.1} parent=11 // pred_region
          _
        $region16: #{tpu_custom_call.1} parent=11 // pred_fallthru
          _
        // Predicated region
        $region17: #{tpu_custom_call.1} parent=11 // pred_check
          %p239 = pneg %p90
        $region18: #{tpu_custom_call.1} parent=11 // pred_check_branch
          %241 = sbr.rel (%p239) target = $region20
        $region19: #{tpu_custom_call.1} parent=11 // pred_region
          _
        $region20: #{tpu_custom_call.1} parent=11 // pred_fallthru
          _
        // Predicated region
        $region21: #{tpu_custom_call.1} parent=11 // pred_check
          %p242 = pneg %p111
        $region22: #{tpu_custom_call.1} parent=11 // pred_check_branch
          %244 = sbr.rel (%p242) target = $region24
        $region23: #{tpu_custom_call.1} parent=11 // pred_region
          _
        $region24: #{tpu_custom_call.1} parent=11 // pred_fallthru
          _
        // Predicated region
        $region25: #{tpu_custom_call.1} parent=11 // pred_check
          %p245 = pneg %p132
        $region26: #{tpu_custom_call.1} parent=11 // pred_check_branch
          %247 = sbr.rel (%p245) target = $region28
        $region27: #{tpu_custom_call.1} parent=11 // pred_region
          _
        $region28: #{tpu_custom_call.1} parent=11 // pred_fallthru
          _
        // Predicated region
        $region29: #{tpu_custom_call.1} parent=11 // pred_check
          %p248 = pneg %p153
        $region30: #{tpu_custom_call.1} parent=11 // pred_check_branch
          %250 = sbr.rel (%p248) target = $region32
        $region31: #{tpu_custom_call.1} parent=11 // pred_region
          _
        $region32: #{tpu_custom_call.1} parent=11 // pred_fallthru
          _
        // Predicated region
        $region33: #{tpu_custom_call.1} parent=11 // pred_check
          %p251 = pneg %p174
        $region34: #{tpu_custom_call.1} parent=11 // pred_check_branch
          %253 = sbr.rel (%p251) target = $region36
        $region35: #{tpu_custom_call.1} parent=11 // pred_region
          _
        $region36: #{tpu_custom_call.1} parent=11 // pred_fallthru
          _
        // Predicated region
        $region37: #{tpu_custom_call.1} parent=11 // pred_check
          %p254 = pneg %p195
        $region38: #{tpu_custom_call.1} parent=11 // pred_check_branch
          %256 = sbr.rel (%p254) target = $region40
        $region39: #{tpu_custom_call.1} parent=11 // pred_region
          _
        $region40: #{tpu_custom_call.1} parent=11 // pred_fallthru
          _
      $region12: #{tpu_custom_call.1} parent=5 // pred_fallthru
        _
      %p257 = scmp.lt.s32.totalorder %s22, 2
      // Predicated region
      $region41: #{tpu_custom_call.1} parent=5 // pred_check
        %p258 = pneg %p257
      $region42: #{tpu_custom_call.1} parent=5 // pred_check_branch
        %260 = sbr.rel (%p258) target = $region44
      $region43: #{tpu_custom_call.1} parent=5 // pred_region
        // Predicated region
        $region45: #{tpu_custom_call.1} parent=43 // pred_check
          %p261 = pneg %p42
        $region46: #{tpu_custom_call.1} parent=43 // pred_check_branch
          %263 = sbr.rel (%p261) target = $region48
        $region47: #{tpu_custom_call.1} parent=43 // pred_region
          %s264 = sand.u32 %s32, 1
          %s265 = scalar_lea.sflag [#allocation4], %s264
          %s266 = sand.u32 %s32, 1
          %s267 = smul.addr %s266, 64
          %s268 = scalar_lea.vmem [#allocation3], %s267
          %s270 = ssub.s32 1024, 1024
          %271 = vsyncadd %s265, %s270
          %s272 = smul.addr %s22, 8
          %s273 = smul.addr %s272, 128
          %s274 = scalar_lea.hbm %s0, %s273
          %s275 = sshll.u32 %s268, 4
          %s276 = int_to_ptr.vmem [resolvable:$true] %s275
          %281 = dma.hbm_to_vmem [thread:$0]  %s274, 1024, %s276, %s265, 256, 256, 16
        $region48: #{tpu_custom_call.1} parent=43 // pred_fallthru
          _
      $region44: #{tpu_custom_call.1} parent=5 // pred_fallthru
        _
      %p282 = scmp.le.s32.totalorder 1, %s22
      %p283 = scmp.lt.s32.totalorder %s22, 3
      %p284 = pnand %p282, %p283
      %p285 = pneg %p284
      // Predicated region
      $region49: #{tpu_custom_call.1} parent=5 // pred_check
        _
      $region50: #{tpu_custom_call.1} parent=5 // pred_check_branch
        %287 = sbr.rel (%p284) target = $region52
      $region51: #{tpu_custom_call.1} parent=5 // pred_region
        %s288 = ssub.s32 %s22, 1
        %s289 = sand.u32 %s35, 1
        %s290 = scalar_lea.sflag [#allocation4], %s289
        %s291 = sand.u32 %s35, 1
        %s292 = smul.addr %s291, 64
        %s293 = scalar_lea.vmem [#allocation3], %s292
        // Predicated region
        $region53: #{tpu_custom_call.1} parent=51 // pred_check
          %p294 = pneg %p48
        $region54: #{tpu_custom_call.1} parent=51 // pred_check_branch
          %296 = sbr.rel (%p294) target = $region56
        $region55: #{tpu_custom_call.1} parent=51 // pred_region
          %297 = dma.done %s290, 1024
        $region56: #{tpu_custom_call.1} parent=51 // pred_fallthru
          _
        %s298 = sand.u32 %s35, 1
        %s299 = scalar_lea.sflag [#allocation4], %s298
        %s300 = sand.u32 %s35, 1
        %s301 = smul.addr %s300, 64
        %s302 = scalar_lea.vmem [#allocation3], %s301
        %p303 = pneg %p48
        %p304 = pneg %p45
        %p305 = pneg %p69
        %p306 = pneg %p66
        %p307 = pneg %p90
        %p308 = pneg %p87
        %p309 = pneg %p111
        %p310 = pneg %p108
        %p311 = pneg %p132
        %p312 = pneg %p129
        %p313 = pneg %p153
        %p314 = pneg %p150
        %p315 = pneg %p174
        %p316 = pneg %p171
        %p317 = pneg %p195
        %p318 = pneg %p192
        %p319 = pneg %p221
        %p320 = pneg %p218
        %s321 = sand.u32 %s208, 1
        %s322 = scalar_lea.sflag [#allocation5], %s321
        %s323 = sand.u32 %s208, 1
        %s324 = smul.addr %s323, 64
        %s325 = scalar_lea.vmem [#allocation6], %s324
        %v326 = vld [vmem:[%s293] sm:$0xff]
        %v327 = vld [vmem:[%s293 + $0x8] sm:$0xff]
        %v328 = vld [vmem:[%s293 + $0x10] sm:$0xff]
        %v329 = vld [vmem:[%s293 + $0x18] sm:$0xff]
        %v330 = vld [vmem:[%s293 + $0x20] sm:$0xff]
        %v331 = vld [vmem:[%s293 + $0x28] sm:$0xff]
        %v332 = vld [vmem:[%s293 + $0x30] sm:$0xff]
        %v333 = vld [vmem:[%s293 + $0x38] sm:$0xff]
        %v334 = vld [vmem:[%s1] sm:$0x1]
        %v335 = vld [vmem:[#allocation2] sm:$0x1]
        %337 = vset.pattern.permute.xlu0 0
        %338 = vperm.xlu0 %337, %v335
        %v339 = vpop.permute.xlu0 %338
        %v341 = vlaneseq
        %v342 = vshrl.u32 %v341, 7
        %v343 = vsub.s32 0, %v342
        %v344 = vrot.slane %v339, %v343
        %vm345 = vcmask 261120
        %v347 = vsel %vm345, %v334, 0
        %349 = vmatprep.subr.mxu0 0.0
        %350 = vmatpush1.msra.mxu0 0.0
        %351 = vmatprep.subr.mxu0 0.0
        %352 = vmatpush1.msra.mxu0 0.0
        %353 = vmatprep.subr.mxu0 0.0
        %354 = vmatpush1.msra.mxu0 0.0
        %355 = vmatprep.subr.mxu0 0.0
        %356 = vmatpush1.msra.mxu0 0.0
        %357 = vmatprep.subr.mxu0 0.0
        %358 = vmatpush1.msra.mxu0 0.0
        %359 = vmatprep.subr.mxu0 0.0
        %360 = vmatpush1.msra.mxu0 0.0
        %361 = vmatprep.subr.mxu0 0.0
        %362 = vmatpush1.msra.mxu0 0.0
        %363 = vmatprep.subr.mxu0 0.0
        %364 = vmatpush1.msra.mxu0 0.0
        %365 = vmatprep.subr.mxu0 0.0
        %366 = vmatpush1.msra.mxu0 0.0
        %367 = vmatprep.subr.mxu0 0.0
        %368 = vmatpush1.msra.mxu0 0.0
        %369 = vmatprep.subr.mxu0 0.0
        %370 = vmatpush1.msra.mxu0 0.0
        %371 = vmatprep.subr.mxu0 0.0
        %372 = vmatpush1.msra.mxu0 0.0
        %373 = vmatprep.subr.mxu0 %v333
        %374 = vmatpush1.msra.mxu0 %v332
        %375 = vmatprep.subr.mxu0 %v331
        %376 = vmatpush1.msra.mxu0 %v330
        %377 = vmatprep.subr.mxu0 %v329
        %378 = vmatpush1.msra.mxu0 %v328
        %379 = vmatprep.subr.mxu0 %v327
        %380 = vmatpush1.msra.mxu0 %v326
        %381 = vmatprep.subr.mxu0 0.0
        %382 = vmatpush2.msra.mxu0 0.0
        %383 = vmatprep.subr.mxu0 0.0
        %384 = vmatpush2.msra.mxu0 0.0
        %385 = vmatprep.subr.mxu0 0.0
        %386 = vmatpush2.msra.mxu0 0.0
        %387 = vmatprep.subr.mxu0 0.0
        %388 = vmatpush2.msra.mxu0 0.0
        %389 = vmatprep.subr.mxu0 0.0
        %390 = vmatpush2.msra.mxu0 0.0
        %391 = vmatprep.subr.mxu0 0.0
        %392 = vmatpush2.msra.mxu0 0.0
        %393 = vmatprep.subr.mxu0 0.0
        %394 = vmatpush2.msra.mxu0 0.0
        %395 = vmatprep.subr.mxu0 0.0
        %396 = vmatpush2.msra.mxu0 0.0
        %397 = vmatprep.subr.mxu0 0.0
        %398 = vmatpush2.msra.mxu0 0.0
        %399 = vmatprep.subr.mxu0 0.0
        %400 = vmatpush2.msra.mxu0 0.0
        %401 = vmatprep.subr.mxu0 0.0
        %402 = vmatpush2.msra.mxu0 0.0
        %403 = vmatprep.subr.mxu0 0.0
        %404 = vmatpush2.msra.mxu0 0.0
        %405 = vmatprep.subr.mxu0 0.0
        %406 = vmatpush2.msra.mxu0 0.0
        %407 = vmatprep.subr.mxu0 0.0
        %408 = vmatpush2.msra.mxu0 0.0
        %409 = vmatprep.subr.mxu0 0.0
        %410 = vmatpush2.msra.mxu0 0.0
        %411 = vmatprep.subr.mxu0 0.0
        %412 = vmatpush2.msra.mxu0 0.0
        %413 = vmatprep.mubr.f32.mxu0 0.0
        %414 = vmatmul.mubr.f32.gmra.mxu0 %v347
        %v415 = vpop.f32.mrf.mxu0
        %v416 = vadd.f32 %v344, %v415
        %v417 = vpop.f32.mrf.mxu0
        %v418 = vadd.f32 %v344, %v417
        %419 = vdwg.mxu0
        %vm420 = vcmask 1040384
        %v421 = vsel %vm420, %v416, -inf
        %v422 = vsel %vm420, %v418, -inf
        %v423 = vmax.f32 %v421, %v422
        %424 = vmax.xlane.f32.xlu0 %v423
        %v425 = vpop.xlane.xlu0 %424
        %v426 = vsub.f32 %v416, %v425
        %v427 = vsub.f32 %v418, %v425
        %v428 = vmul.f32 %v426, 1.442695
        %v429 = vpow.pop %v428
        %v430 = vmul.f32 %v427, 1.442695
        %v431 = vpow.pop %v430
        %v432 = vsel %vm420, %v429, 0.0
        %v433 = vsel %vm420, %v431, 0.0
        %v434 = vadd.f32 %v432, %v433
        %435 = vadd.xlane.f32.xlu0 %v434
        %v436 = vpop.xlane.xlu0 %435
        %v437 = vlaneseq
        %v438 = vshrl.u32 %v437, 7
        %v439 = vsub.s32 0, %v438
        %v440 = vrot.slane %v429, %v439
        %v441 = vlaneseq
        %v442 = vshrl.u32 %v441, 7
        %v443 = vsub.s32 0, %v442
        %v444 = vrot.slane %v431, %v443
        %v445 = vmul.f32 %v326, %v440
        %v446 = vmul.f32 %v327, %v444
        %v447 = vmul.f32 %v328, %v440
        %v448 = vmul.f32 %v329, %v444
        %v449 = vmul.f32 %v330, %v440
        %v450 = vmul.f32 %v331, %v444
        %v451 = vmul.f32 %v332, %v440
        %v452 = vmul.f32 %v333, %v444
        %v453 = vadd.f32 %v445, %v446
        %454 = vadd.xlane.f32.xlu0 %v453
        %v455 = vpop.xlane.xlu0 %454
        %v456 = vadd.f32 %v447, %v448
        %457 = vadd.xlane.f32.xlu0 %v456
        %v458 = vpop.xlane.xlu0 %457
        %v459 = vadd.f32 %v449, %v450
        %460 = vadd.xlane.f32.xlu0 %v459
        %v461 = vpop.xlane.xlu0 %460
        %v462 = vadd.f32 %v451, %v452
        %463 = vadd.xlane.f32.xlu0 %v462
        %v464 = vpop.xlane.xlu0 %463
        %v465 = vlaneseq
        %v466 = vshrl.u32 %v465, 7
        %v467 = vsub.s32 0, %v466
        %v468 = vrot.slane %v436, %v467
        %v469 = vrcp.pop %v468
        %v470 = vmul.f32 %v455, %v469
        %v471 = vmul.f32 %v458, %v469
        %v472 = vmul.f32 %v461, %v469
        %v473 = vmul.f32 %v464, %v469
        %v474 = vld [vmem:[%s3] sm:$0xf]
        %v475 = vld [vmem:[%s4] sm:$0xf]
        %v477 = vsel %vm345, %v474, 0
        %479 = vmatprep.subr.mxu0 0.0
        %480 = vmatpush1.msra.mxu0 0.0
        %481 = vmatprep.subr.mxu0 0.0
        %482 = vmatpush1.msra.mxu0 0.0
        %483 = vmatprep.subr.mxu0 0.0
        %484 = vmatpush1.msra.mxu0 0.0
        %485 = vmatprep.subr.mxu0 0.0
        %486 = vmatpush1.msra.mxu0 0.0
        %487 = vmatprep.subr.mxu0 0.0
        %488 = vmatpush1.msra.mxu0 0.0
        %489 = vmatprep.subr.mxu0 0.0
        %490 = vmatpush1.msra.mxu0 0.0
        %491 = vmatprep.subr.mxu0 0.0
        %492 = vmatpush1.msra.mxu0 0.0
        %493 = vmatprep.subr.mxu0 0.0
        %494 = vmatpush1.msra.mxu0 0.0
        %495 = vmatprep.subr.mxu0 0.0
        %496 = vmatpush1.msra.mxu0 0.0
        %497 = vmatprep.subr.mxu0 0.0
        %498 = vmatpush1.msra.mxu0 0.0
        %499 = vmatprep.subr.mxu0 0.0
        %500 = vmatpush1.msra.mxu0 0.0
        %501 = vmatprep.subr.mxu0 0.0
        %502 = vmatpush1.msra.mxu0 0.0
        %503 = vmatprep.subr.mxu0 0.0
        %504 = vmatpush1.msra.mxu0 %v473
        %505 = vmatprep.subr.mxu0 0.0
        %506 = vmatpush1.msra.mxu0 %v472
        %507 = vmatprep.subr.mxu0 0.0
        %508 = vmatpush1.msra.mxu0 %v471
        %509 = vmatprep.subr.mxu0 0.0
        %510 = vmatpush1.msra.mxu0 %v470
        %511 = vmatprep.subr.mxu0 0.0
        %512 = vmatpush2.msra.mxu0 0.0
        %513 = vmatprep.subr.mxu0 0.0
        %514 = vmatpush2.msra.mxu0 0.0
        %515 = vmatprep.subr.mxu0 0.0
        %516 = vmatpush2.msra.mxu0 0.0
        %517 = vmatprep.subr.mxu0 0.0
        %518 = vmatpush2.msra.mxu0 0.0
        %519 = vmatprep.subr.mxu0 0.0
        %520 = vmatpush2.msra.mxu0 0.0
        %521 = vmatprep.subr.mxu0 0.0
        %522 = vmatpush2.msra.mxu0 0.0
        %523 = vmatprep.subr.mxu0 0.0
        %524 = vmatpush2.msra.mxu0 0.0
        %525 = vmatprep.subr.mxu0 0.0
        %526 = vmatpush2.msra.mxu0 0.0
        %527 = vmatprep.subr.mxu0 0.0
        %528 = vmatpush2.msra.mxu0 0.0
        %529 = vmatprep.subr.mxu0 0.0
        %530 = vmatpush2.msra.mxu0 0.0
        %531 = vmatprep.subr.mxu0 0.0
        %532 = vmatpush2.msra.mxu0 0.0
        %533 = vmatprep.subr.mxu0 0.0
        %534 = vmatpush2.msra.mxu0 0.0
        %535 = vmatprep.subr.mxu0 0.0
        %536 = vmatpush2.msra.mxu0 0.0
        %537 = vmatprep.subr.mxu0 0.0
        %538 = vmatpush2.msra.mxu0 0.0
        %539 = vmatprep.subr.mxu0 0.0
        %540 = vmatpush2.msra.mxu0 0.0
        %541 = vmatprep.subr.mxu0 0.0
        %542 = vmatpush2.msra.mxu0 0.0
        %543 = vmatprep.mubr.f32.mxu0 0.0
        %544 = vmatmul.mubr.f32.gmra.mxu0 %v477
        %v545 = vpop.f32.mrf.mxu0
        %v546 = vadd.f32 %v475, %v545
        %v547 = vpop.f32.mrf.mxu0
        %548 = vdwg.mxu0
        %vm549 = vcmp.ge.f32.partialorder %v546, 0.0
        %v550 = vld [vmem:[%s5] sm:$0xf]
        %v551 = vmul.f32 %v550, %v546
        %v552 = vsel %vm549, %v546, %v551
        %v553 = vld [vmem:[%s6] sm:$0xff]
        %v554 = vld [vmem:[%s6 + $0x8] sm:$0xff]
        %v555 = vld [vmem:[%s6 + $0x10] sm:$0xff]
        %v556 = vld [vmem:[%s6 + $0x18] sm:$0xff]
        %v557 = vld [vmem:[%s7] sm:$0xff]
        %v558 = vld [vmem:[%s7 + $0x8] sm:$0xff]
        %v559 = vld [vmem:[%s7 + $0x10] sm:$0xff]
        %v560 = vld [vmem:[%s7 + $0x18] sm:$0xff]
        %vm561 = vcmask 31744
        %v563 = vsel %vm561, %v553, 0
        %v566 = vsel %vm561, %v554, 0
        %v569 = vsel %vm561, %v555, 0
        %v572 = vsel %vm561, %v556, 0
        %vm574 = vcmask 1043456
        %v576 = vsel %vm574, %v552, 0
        %578 = vmatprep.subr.mxu0 0.0
        %579 = vmatpush1.msra.mxu0 0.0
        %580 = vmatprep.subr.mxu0 0.0
        %581 = vmatpush1.msra.mxu0 0.0
        %582 = vmatprep.subr.mxu0 0.0
        %583 = vmatpush1.msra.mxu0 0.0
        %584 = vmatprep.subr.mxu0 0.0
        %585 = vmatpush1.msra.mxu0 0.0
        %586 = vmatprep.subr.mxu0 0.0
        %587 = vmatpush1.msra.mxu0 0.0
        %588 = vmatprep.subr.mxu0 0.0
        %589 = vmatpush1.msra.mxu0 0.0
        %590 = vmatprep.subr.mxu0 0.0
        %591 = vmatpush1.msra.mxu0 0.0
        %592 = vmatprep.subr.mxu0 0.0
        %593 = vmatpush1.msra.mxu0 0.0
        %594 = vmatprep.subr.mxu0 0.0
        %595 = vmatpush1.msra.mxu0 0.0
        %596 = vmatprep.subr.mxu0 0.0
        %597 = vmatpush1.msra.mxu0 0.0
        %598 = vmatprep.subr.mxu0 0.0
        %599 = vmatpush1.msra.mxu0 0.0
        %600 = vmatprep.subr.mxu0 0.0
        %601 = vmatpush1.msra.mxu0 0.0
        %602 = vmatprep.subr.mxu0 0.0
        %603 = vmatpush1.msra.mxu0 0.0
        %604 = vmatprep.subr.mxu0 0.0
        %605 = vmatpush1.msra.mxu0 0.0
        %606 = vmatprep.subr.mxu0 0.0
        %607 = vmatpush1.msra.mxu0 0.0
        %608 = vmatprep.subr.mxu0 0.0
        %609 = vmatpush1.msra.mxu0 %v576
        %610 = vmatprep.subr.mxu0 0.0
        %611 = vmatpush2.msra.mxu0 0.0
        %612 = vmatprep.subr.mxu0 0.0
        %613 = vmatpush2.msra.mxu0 0.0
        %614 = vmatprep.subr.mxu0 0.0
        %615 = vmatpush2.msra.mxu0 0.0
        %616 = vmatprep.subr.mxu0 0.0
        %617 = vmatpush2.msra.mxu0 0.0
        %618 = vmatprep.subr.mxu0 0.0
        %619 = vmatpush2.msra.mxu0 0.0
        %620 = vmatprep.subr.mxu0 0.0
        %621 = vmatpush2.msra.mxu0 0.0
        %622 = vmatprep.subr.mxu0 0.0
        %623 = vmatpush2.msra.mxu0 0.0
        %624 = vmatprep.subr.mxu0 0.0
        %625 = vmatpush2.msra.mxu0 0.0
        %626 = vmatprep.subr.mxu0 0.0
        %627 = vmatpush2.msra.mxu0 0.0
        %628 = vmatprep.subr.mxu0 0.0
        %629 = vmatpush2.msra.mxu0 0.0
        %630 = vmatprep.subr.mxu0 0.0
        %631 = vmatpush2.msra.mxu0 0.0
        %632 = vmatprep.subr.mxu0 0.0
        %633 = vmatpush2.msra.mxu0 0.0
        %634 = vmatprep.subr.mxu0 0.0
        %635 = vmatpush2.msra.mxu0 0.0
        %636 = vmatprep.subr.mxu0 0.0
        %637 = vmatpush2.msra.mxu0 0.0
        %638 = vmatprep.subr.mxu0 0.0
        %639 = vmatpush2.msra.mxu0 0.0
        %640 = vmatprep.subr.mxu0 0.0
        %641 = vmatpush2.msra.mxu0 0.0
        %642 = vmatprep.mubr.f32.mxu0 0.0
        %643 = vmatmul.mubr.f32.gmra.mxu0 %v563
        %v644 = vpop.f32.mrf.mxu0
        %v645 = vadd.f32 %v557, %v644
        %v646 = vpop.f32.mrf.mxu0
        %647 = vmatprep.mubr.f32.mxu0 0.0
        %648 = vmatmul.mubr.f32.gmra.mxu0 %v566
        %v649 = vpop.f32.mrf.mxu0
        %v650 = vadd.f32 %v558, %v649
        %v651 = vpop.f32.mrf.mxu0
        %652 = vmatprep.mubr.f32.mxu0 0.0
        %653 = vmatmul.mubr.f32.gmra.mxu0 %v569
        %v654 = vpop.f32.mrf.mxu0
        %v655 = vadd.f32 %v559, %v654
        %v656 = vpop.f32.mrf.mxu0
        %657 = vmatprep.mubr.f32.mxu0 0.0
        %658 = vmatmul.mubr.f32.gmra.mxu0 %v572
        %v659 = vpop.f32.mrf.mxu0
        %v660 = vadd.f32 %v560, %v659
        %v661 = vpop.f32.mrf.mxu0
        %662 = vdwg.mxu0
        %664 = vset.pattern.permute.xlu0 0
        %665 = vperm.xlu0 %664, %v645
        %v666 = vpop.permute.xlu0 %665
        %669 = vset.pattern.permute.xlu0 0
        %670 = vperm.xlu0 %669, %v650
        %v671 = vpop.permute.xlu0 %670
        %674 = vset.pattern.permute.xlu0 0
        %675 = vperm.xlu0 %674, %v655
        %v676 = vpop.permute.xlu0 %675
        %679 = vset.pattern.permute.xlu0 0
        %680 = vperm.xlu0 %679, %v660
        %v681 = vpop.permute.xlu0 %680
        %v683 = vadd.f32 %v326, %v666
        %v684 = vadd.f32 %v327, %v666
        %v685 = vadd.f32 %v328, %v671
        %v686 = vadd.f32 %v329, %v671
        %v687 = vadd.f32 %v330, %v676
        %v688 = vadd.f32 %v331, %v676
        %v689 = vadd.f32 %v332, %v681
        %v690 = vadd.f32 %v333, %v681
        %691 = vst [vmem:[%s325] sm:$0xff] %v683
        %692 = vst [vmem:[%s325 + $0x8] sm:$0xff] %v684
        %693 = vst [vmem:[%s325 + $0x10] sm:$0xff] %v685
        %694 = vst [vmem:[%s325 + $0x18] sm:$0xff] %v686
        %695 = vst [vmem:[%s325 + $0x20] sm:$0xff] %v687
        %696 = vst [vmem:[%s325 + $0x28] sm:$0xff] %v688
        %697 = vst [vmem:[%s325 + $0x30] sm:$0xff] %v689
        %698 = vst [vmem:[%s325 + $0x38] sm:$0xff] %v690
        %s699 = sand.u32 %s208, 1
        %s700 = scalar_lea.sflag [#allocation5], %s699
        %s701 = sand.u32 %s208, 1
        %s702 = smul.addr %s701, 64
        %s703 = scalar_lea.vmem [#allocation6], %s702
        // Predicated region
        $region57: #{tpu_custom_call.1} parent=51 // pred_check
          %p704 = pneg %p218
        $region58: #{tpu_custom_call.1} parent=51 // pred_check_branch
          %706 = sbr.rel (%p704) target = $region60
        $region59: #{tpu_custom_call.1} parent=51 // pred_region
          %s708 = ssub.s32 1024, 1024
          %709 = vsyncadd %s700, %s708
          %s710 = smul.addr %s27, 8
          %s711 = smul.addr %s710, 128
          %s712 = scalar_lea.hbm %s8, %s711
          %s713 = sshll.u32 %s703, 4
          %s714 = int_to_ptr.vmem [resolvable:$true] %s713
          %719 = dma.vmem_to_hbm [thread:$0]  %s714, 1024, %s712, %s700, 256, 256, 16
        $region60: #{tpu_custom_call.1} parent=51 // pred_fallthru
          _
      $region52: #{tpu_custom_call.1} parent=5 // pred_fallthru
        _
      %p720 = scmp.le.s32.totalorder 2, %s22
      // Predicated region
      $region61: #{tpu_custom_call.1} parent=5 // pred_check
        %p721 = pneg %p720
      $region62: #{tpu_custom_call.1} parent=5 // pred_check_branch
        %723 = sbr.rel (%p721) target = $region64
      $region63: #{tpu_custom_call.1} parent=5 // pred_region
        %s724 = ssub.s32 %s22, 2
        // Predicated region
        $region65: #{tpu_custom_call.1} parent=63 // pred_check
          %p725 = pneg %p224
        $region66: #{tpu_custom_call.1} parent=63 // pred_check_branch
          %727 = sbr.rel (%p725) target = $region68
        $region67: #{tpu_custom_call.1} parent=63 // pred_region
          %s728 = sand.u32 %s209, 1
          %s729 = scalar_lea.sflag [#allocation5], %s728
          %s730 = sand.u32 %s209, 1
          %s731 = smul.addr %s730, 64
          %s732 = scalar_lea.vmem [#allocation6], %s731
          %733 = dma.done %s729, 1024
        $region68: #{tpu_custom_call.1} parent=63 // pred_fallthru
          _
      $region64: #{tpu_custom_call.1} parent=5 // pred_fallthru
        _
    $region6: #{tpu_custom_call.1} parent=1 // loop_footer
      %s26 = sadd.s32 1, %s22
    $region7: #{tpu_custom_call.1} parent=1 // loop_footer_branch
      %21 = sbr.rel target = $region3
    $region8: #{tpu_custom_call.1} parent=1 // loop_exit
      _
    %734 = vsyncpa [#allocation4], 1
    %s735 = scalar_lea.sflag [#allocation4], 1
    %736 = vsyncpa %s735, 1
    %737 = vsyncpa [#allocation5], 1
    %s738 = scalar_lea.sflag [#allocation5], 1
    %739 = vsyncpa %s738, 1

</llo_original>
